<compile_context>
chip_gen: v7x
topology: tpu7x:2x2x1
jax: 0.10.0
libtpu: 0.0.40
codegen_flags: <defaults>
</compile_context>

<pallas_src>
import jax
import jax.numpy as jnp
from jax.experimental import pallas as pl
from jax.experimental.pallas import tpu as pltpu

LANE = 128      # label axis padded to the TPU lane width -> dense stores
SUBLANE = 8     # f32 sublane height: batch / vocab padded to a multiple


# ----------------------------- Pallas kernel ------------------------------ #
def fasttext_kernel(ids_ref, emb_ref, wf_ref, bf_ref, out_ref, acc_ref):
    """grid = (batch tiles,)  ["parallel"].

    ids_ref : SMEM [B_pad, S] int32   (scalar-prefetched token ids)
    emb_ref : VMEM [V_pad, E] f32     (resident embedding table)
    wf_ref  : VMEM [E, 128]   f32     (fused fc1@fc2 weight, label-padded)
    bf_ref  : VMEM [1, 128]   f32     (fused bias; padded lanes = -1e30)
    out_ref : VMEM [TB, 128]  f32     (softmax probabilities, lane-dense)
    acc_ref : VMEM [TB, E]    f32     (per-row mean-embedding scratch)
    """
    i = pl.program_id(0)
    TB, E = acc_ref.shape
    S = ids_ref.shape[1]
    inv_s = jnp.float32(1.0 / S)

    # Gather + mean over seq, one batch row at a time (O(B*S*E) VPU adds).
    # TB and S are small & static here, so plain unrolled Python loops are
    # fine; for large TB/S switch to lax.fori_loop(..., unroll=k) to bound
    # code size and vreg pressure.
    for b in range(TB):
        row = jnp.zeros((1, E), jnp.float32)
        for s in range(S):
            tok = ids_ref[i * TB + b, s]             # scalar read from SMEM
            row = row + emb_ref[pl.ds(tok, 1), :]    # dynamic row gather
        acc_ref[pl.ds(b, 1), :] = row * inv_s        # mean applied in f32

    # Fused fc1 @ fc2 head on the MXU, then an exact row softmax.
    z = jnp.dot(acc_ref[...], wf_ref[...],
                preferred_element_type=jnp.float32) + bf_ref[...]   # [TB, 128]
    z = z - jnp.max(z, axis=-1, keepdims=True)
    e = jnp.exp(z)                                   # padded lanes: exp(-1e30)=0
    out_ref[...] = e / jnp.sum(e, axis=-1, keepdims=True)


# ------------------------------- wrapper ----------------------------------- #
def fasttext_forward(input_ids, emb, w1, b1, w2, b2, labels=None):
    B, S = input_ids.shape
    V, E = emb.shape
    num_labels = w2.shape[1]

    # --- fuse fc1/fc2 (purely linear, so fusion is exact), pad labels to 128
    wf = w1 @ w2                                     # [E, num_labels]
    bf = b1 @ w2 + b2                                # [1, num_labels]
    wf_p = jnp.zeros((E, LANE), jnp.float32).at[:, :num_labels].set(wf)
    bf_p = jnp.full((1, LANE), -1e30, jnp.float32).at[:, :num_labels].set(bf)

    # --- batch padding / tiling --------------------------------------------
    B_pad = pl.cdiv(B, SUBLANE) * SUBLANE
    tb = min(B_pad, 16)
    # v7x has 2 TensorCores: keep >= 2 batch tiles when the batch allows it.
    if B_pad // tb < 2 and B_pad >= 2 * SUBLANE:
        tb = pl.cdiv(B_pad // 2, SUBLANE) * SUBLANE
    B_pad = pl.cdiv(B_pad, tb) * tb
    ids_p = jnp.zeros((B_pad, S), jnp.int32).at[:B].set(input_ids.astype(jnp.int32))

    # --- VMEM-resident embedding table (pad vocab to a sublane multiple) ----
    V_pad = pl.cdiv(V, SUBLANE) * SUBLANE
    emb_p = emb.astype(jnp.float32)
    if V_pad != V:
        emb_p = jnp.zeros((V_pad, E), jnp.float32).at[:V].set(emb_p)

    grid = (B_pad // tb,)

    # Explicit scoped-VMEM budget: 2x (double buffering) on every block,
    # ~30% headroom, capped below v7x's 64 MiB physical VMEM.
    emb_bytes = V_pad * E * 4
    blk_bytes = 2 * (E * LANE * 4 + LANE * 4 + tb * LANE * 4) + tb * E * 4
    vmem_limit = int(1.3 * (2 * emb_bytes + blk_bytes))
    vmem_limit = min(max(vmem_limit, 16 << 20), 48 << 20)

    probs_padded = pl.pallas_call(
        fasttext_kernel,
        out_shape=jax.ShapeDtypeStruct((B_pad, LANE), jnp.float32),
        grid_spec=pltpu.PrefetchScalarGridSpec(
            num_scalar_prefetch=1,                   # ids -> SMEM
            grid=grid,
            in_specs=[
                pl.BlockSpec((V_pad, E), lambda i, ids: (0, 0)),   # resident emb
                pl.BlockSpec((E, LANE), lambda i, ids: (0, 0)),    # fused weight
                pl.BlockSpec((1, LANE), lambda i, ids: (0, 0)),    # fused bias
            ],
            out_specs=pl.BlockSpec((tb, LANE), lambda i, ids: (i, 0)),
            scratch_shapes=[pltpu.VMEM((tb, E), jnp.float32)],
        ),
        compiler_params=pltpu.CompilerParams(
            dimension_semantics=("parallel",),
            vmem_limit_bytes=vmem_limit,
        ),
    )(ids_p, emb_p, wf_p, bf_p)

    probs = probs_padded[:B, :num_labels]            # softmax probabilities

    outputs = (probs,)
    if labels is not None:
        # Mirrors the (quirky) PyTorch module: CrossEntropyLoss applied to the
        # already-softmaxed logits, i.e. NLL(log_softmax(softmax(z))).  This is
        # intentional; do not "fix" to a standard CE on raw logits.
        logp = jax.nn.log_softmax(probs, axis=-1)
        loss = -jnp.mean(jnp.take_along_axis(logp, labels[:, None], axis=-1))
        outputs = (loss,) + outputs
    return outputs


# ------------------------------- main -------------------------------------- #
if __name__ == "__main__":
    vocab_size = 256
    embed_size = 32
    hidden = 10
    num_labels = 2
    batch = 2
    seq = 8

    key = jax.random.PRNGKey(0)
    k_ids, k_emb, k_w1, k_b1, k_w2, k_b2, k_lab = jax.random.split(key, 7)

    input_ids = jax.random.randint(k_ids, (batch, seq), 0, vocab_size, jnp.int32)
    emb = jax.random.normal(k_emb, (vocab_size, embed_size), jnp.float32) * 0.1
    # nn.Linear(embed_size, 10): weight [10, E] -> stored transposed [E, 10]
    w1 = jax.random.normal(k_w1, (embed_size, hidden), jnp.float32) * 0.1
    b1 = jax.random.normal(k_b1, (1, hidden), jnp.float32) * 0.1
    # nn.Linear(10, 2): weight [2, 10] -> stored transposed [10, 2]
    w2 = jax.random.normal(k_w2, (hidden, num_labels), jnp.float32) * 0.1
    b2 = jax.random.normal(k_b2, (1, num_labels), jnp.float32) * 0.1
    labels = jax.random.randint(k_lab, (batch,), 0, num_labels, jnp.int32)

    # Run kernel (with and without labels, as in the PyTorch forward).
    (probs,) = fasttext_forward(input_ids, emb, w1, b1, w2, b2)
    loss, probs_l = fasttext_forward(input_ids, emb, w1, b1, w2, b2, labels)
    jax.block_until_ready((probs, loss, probs_l))

    # Pure-JAX f32 reference of the forward path.
    ref_emb = jnp.take(emb, input_ids, axis=0)                # [B, S, E]
    ref_h = ref_emb.mean(axis=1) @ w1 + b1                    # [B, 10]
    ref_z = ref_h @ w2 + b2                                   # [B, 2]
    ref_probs = jax.nn.softmax(ref_z, axis=1)

    assert probs.shape == (batch, num_labels), "bad output shape"
    assert jnp.allclose(probs, ref_probs, atol=1e-2, rtol=1e-2), "mismatch"
    assert jnp.allclose(jnp.sum(probs, axis=-1), 1.0, atol=1e-3), "rows not normalized"
    assert jnp.allclose(probs, probs_l, atol=1e-6), "labels path changed logits"
    assert bool(jnp.isfinite(loss)), "loss not finite"

    print("KERNEL_OK")
</pallas_src>

<mosaic_0001>
module attributes {stable_mosaic.version = 11 : i64} {
  func.func @fasttext_kernel(%arg0: i32, %arg1: memref<8x8xi32, #tpu.memory_space<smem>>, %arg2: memref<256x32xf32, #tpu.memory_space<vmem>>, %arg3: memref<32x128xf32, #tpu.memory_space<vmem>>, %arg4: memref<1x128xf32, #tpu.memory_space<vmem>>, %arg5: memref<8x128xf32, #tpu.memory_space<vmem>>, %arg6: memref<8x32xf32, #tpu.memory_space<vmem>>) attributes {dimension_semantics = [#tpu.dimension_semantics<parallel>], iteration_bounds = array<i64: 1>, scalar_prefetch = 1 : i64, scratch_operands = 1 : i64, tpu.core_type = #tpu.core_type<tc>, window_params = [{pipeline_mode = #tpu.pipeline_mode<synchronous>, transform_indices = @transform_0, window_bounds = array<i64: 256, 32>}, {pipeline_mode = #tpu.pipeline_mode<synchronous>, transform_indices = @transform_1, window_bounds = array<i64: 32, 128>}, {pipeline_mode = #tpu.pipeline_mode<synchronous>, transform_indices = @transform_2, window_bounds = array<i64: 1, 128>}, {transform_indices = @transform_3, window_bounds = array<i64: 8, 128>}]} {
    %cst = arith.constant 0.000000e+00 : f32
    %0 = vector.broadcast %cst : f32 to vector<1x32xf32>
    %c8_i32 = arith.constant 8 : i32
    %1 = arith.muli %arg0, %c8_i32 : i32
    %c0_i32 = arith.constant 0 : i32
    %2 = arith.addi %1, %c0_i32 : i32
    %3 = arith.index_cast %2 : i32 to index
    %c0 = arith.constant 0 : index
    %4 = memref.load %arg1[%3, %c0] : memref<8x8xi32, #tpu.memory_space<smem>>
    %5 = arith.index_cast %4 : i32 to index
    %c0_0 = arith.constant 0 : index
    %6 = vector.load %arg2[%5, %c0_0] : memref<256x32xf32, #tpu.memory_space<vmem>>, vector<1x32xf32>
    %7 = arith.addf %0, %6 : vector<1x32xf32>
    %c8_i32_1 = arith.constant 8 : i32
    %8 = arith.muli %arg0, %c8_i32_1 : i32
    %c0_i32_2 = arith.constant 0 : i32
    %9 = arith.addi %8, %c0_i32_2 : i32
    %10 = arith.index_cast %9 : i32 to index
    %c1 = arith.constant 1 : index
    %11 = memref.load %arg1[%10, %c1] : memref<8x8xi32, #tpu.memory_space<smem>>
    %12 = arith.index_cast %11 : i32 to index
    %c0_3 = arith.constant 0 : index
    %13 = vector.load %arg2[%12, %c0_3] : memref<256x32xf32, #tpu.memory_space<vmem>>, vector<1x32xf32>
    %14 = arith.addf %7, %13 : vector<1x32xf32>
    %c8_i32_4 = arith.constant 8 : i32
    %15 = arith.muli %arg0, %c8_i32_4 : i32
    %c0_i32_5 = arith.constant 0 : i32
    %16 = arith.addi %15, %c0_i32_5 : i32
    %17 = arith.index_cast %16 : i32 to index
    %c2 = arith.constant 2 : index
    %18 = memref.load %arg1[%17, %c2] : memref<8x8xi32, #tpu.memory_space<smem>>
    %19 = arith.index_cast %18 : i32 to index
    %c0_6 = arith.constant 0 : index
    %20 = vector.load %arg2[%19, %c0_6] : memref<256x32xf32, #tpu.memory_space<vmem>>, vector<1x32xf32>
    %21 = arith.addf %14, %20 : vector<1x32xf32>
    %c8_i32_7 = arith.constant 8 : i32
    %22 = arith.muli %arg0, %c8_i32_7 : i32
    %c0_i32_8 = arith.constant 0 : i32
    %23 = arith.addi %22, %c0_i32_8 : i32
    %24 = arith.index_cast %23 : i32 to index
    %c3 = arith.constant 3 : index
    %25 = memref.load %arg1[%24, %c3] : memref<8x8xi32, #tpu.memory_space<smem>>
    %26 = arith.index_cast %25 : i32 to index
    %c0_9 = arith.constant 0 : index
    %27 = vector.load %arg2[%26, %c0_9] : memref<256x32xf32, #tpu.memory_space<vmem>>, vector<1x32xf32>
    %28 = arith.addf %21, %27 : vector<1x32xf32>
    %c8_i32_10 = arith.constant 8 : i32
    %29 = arith.muli %arg0, %c8_i32_10 : i32
    %c0_i32_11 = arith.constant 0 : i32
    %30 = arith.addi %29, %c0_i32_11 : i32
    %31 = arith.index_cast %30 : i32 to index
    %c4 = arith.constant 4 : index
    %32 = memref.load %arg1[%31, %c4] : memref<8x8xi32, #tpu.memory_space<smem>>
    %33 = arith.index_cast %32 : i32 to index
    %c0_12 = arith.constant 0 : index
    %34 = vector.load %arg2[%33, %c0_12] : memref<256x32xf32, #tpu.memory_space<vmem>>, vector<1x32xf32>
    %35 = arith.addf %28, %34 : vector<1x32xf32>
    %c8_i32_13 = arith.constant 8 : i32
    %36 = arith.muli %arg0, %c8_i32_13 : i32
    %c0_i32_14 = arith.constant 0 : i32
    %37 = arith.addi %36, %c0_i32_14 : i32
    %38 = arith.index_cast %37 : i32 to index
    %c5 = arith.constant 5 : index
    %39 = memref.load %arg1[%38, %c5] : memref<8x8xi32, #tpu.memory_space<smem>>
    %40 = arith.index_cast %39 : i32 to index
    %c0_15 = arith.constant 0 : index
    %41 = vector.load %arg2[%40, %c0_15] : memref<256x32xf32, #tpu.memory_space<vmem>>, vector<1x32xf32>
    %42 = arith.addf %35, %41 : vector<1x32xf32>
    %c8_i32_16 = arith.constant 8 : i32
    %43 = arith.muli %arg0, %c8_i32_16 : i32
    %c0_i32_17 = arith.constant 0 : i32
    %44 = arith.addi %43, %c0_i32_17 : i32
    %45 = arith.index_cast %44 : i32 to index
    %c6 = arith.constant 6 : index
    %46 = memref.load %arg1[%45, %c6] : memref<8x8xi32, #tpu.memory_space<smem>>
    %47 = arith.index_cast %46 : i32 to index
    %c0_18 = arith.constant 0 : index
    %48 = vector.load %arg2[%47, %c0_18] : memref<256x32xf32, #tpu.memory_space<vmem>>, vector<1x32xf32>
    %49 = arith.addf %42, %48 : vector<1x32xf32>
    %c8_i32_19 = arith.constant 8 : i32
    %50 = arith.muli %arg0, %c8_i32_19 : i32
    %c0_i32_20 = arith.constant 0 : i32
    %51 = arith.addi %50, %c0_i32_20 : i32
    %52 = arith.index_cast %51 : i32 to index
    %c7 = arith.constant 7 : index
    %53 = memref.load %arg1[%52, %c7] : memref<8x8xi32, #tpu.memory_space<smem>>
    %54 = arith.index_cast %53 : i32 to index
    %c0_21 = arith.constant 0 : index
    %55 = vector.load %arg2[%54, %c0_21] : memref<256x32xf32, #tpu.memory_space<vmem>>, vector<1x32xf32>
    %56 = arith.addf %49, %55 : vector<1x32xf32>
    %cst_22 = arith.constant 1.250000e-01 : f32
    %57 = vector.broadcast %cst_22 : f32 to vector<1x32xf32>
    %58 = arith.mulf %56, %57 : vector<1x32xf32>
    %c0_23 = arith.constant 0 : index
    %c0_24 = arith.constant 0 : index
    %59 = vector.load %arg6[%c0_23, %c0_24] : memref<8x32xf32, #tpu.memory_space<vmem>>, vector<1x32xf32>
    tpu.vector_store %arg6[%c0_23, %c0_24], %58 {strides = array<i32>} : memref<8x32xf32, #tpu.memory_space<vmem>>, vector<1x32xf32>,
    %cst_25 = arith.constant 0.000000e+00 : f32
    %60 = vector.broadcast %cst_25 : f32 to vector<1x32xf32>
    %c8_i32_26 = arith.constant 8 : i32
    %61 = arith.muli %arg0, %c8_i32_26 : i32
    %c1_i32 = arith.constant 1 : i32
    %62 = arith.addi %61, %c1_i32 : i32
    %63 = arith.index_cast %62 : i32 to index
    %c0_27 = arith.constant 0 : index
    %64 = memref.load %arg1[%63, %c0_27] : memref<8x8xi32, #tpu.memory_space<smem>>
    %65 = arith.index_cast %64 : i32 to index
    %c0_28 = arith.constant 0 : index
    %66 = vector.load %arg2[%65, %c0_28] : memref<256x32xf32, #tpu.memory_space<vmem>>, vector<1x32xf32>
    %67 = arith.addf %60, %66 : vector<1x32xf32>
    %c8_i32_29 = arith.constant 8 : i32
    %68 = arith.muli %arg0, %c8_i32_29 : i32
    %c1_i32_30 = arith.constant 1 : i32
    %69 = arith.addi %68, %c1_i32_30 : i32
    %70 = arith.index_cast %69 : i32 to index
    %c1_31 = arith.constant 1 : index
    %71 = memref.load %arg1[%70, %c1_31] : memref<8x8xi32, #tpu.memory_space<smem>>
    %72 = arith.index_cast %71 : i32 to index
    %c0_32 = arith.constant 0 : index
    %73 = vector.load %arg2[%72, %c0_32] : memref<256x32xf32, #tpu.memory_space<vmem>>, vector<1x32xf32>
    %74 = arith.addf %67, %73 : vector<1x32xf32>
    %c8_i32_33 = arith.constant 8 : i32
    %75 = arith.muli %arg0, %c8_i32_33 : i32
    %c1_i32_34 = arith.constant 1 : i32
    %76 = arith.addi %75, %c1_i32_34 : i32
    %77 = arith.index_cast %76 : i32 to index
    %c2_35 = arith.constant 2 : index
    %78 = memref.load %arg1[%77, %c2_35] : memref<8x8xi32, #tpu.memory_space<smem>>
    %79 = arith.index_cast %78 : i32 to index
    %c0_36 = arith.constant 0 : index
    %80 = vector.load %arg2[%79, %c0_36] : memref<256x32xf32, #tpu.memory_space<vmem>>, vector<1x32xf32>
    %81 = arith.addf %74, %80 : vector<1x32xf32>
    %c8_i32_37 = arith.constant 8 : i32
    %82 = arith.muli %arg0, %c8_i32_37 : i32
    %c1_i32_38 = arith.constant 1 : i32
    %83 = arith.addi %82, %c1_i32_38 : i32
    %84 = arith.index_cast %83 : i32 to index
    %c3_39 = arith.constant 3 : index
    %85 = memref.load %arg1[%84, %c3_39] : memref<8x8xi32, #tpu.memory_space<smem>>
    %86 = arith.index_cast %85 : i32 to index
    %c0_40 = arith.constant 0 : index
    %87 = vector.load %arg2[%86, %c0_40] : memref<256x32xf32, #tpu.memory_space<vmem>>, vector<1x32xf32>
    %88 = arith.addf %81, %87 : vector<1x32xf32>
    %c8_i32_41 = arith.constant 8 : i32
    %89 = arith.muli %arg0, %c8_i32_41 : i32
    %c1_i32_42 = arith.constant 1 : i32
    %90 = arith.addi %89, %c1_i32_42 : i32
    %91 = arith.index_cast %90 : i32 to index
    %c4_43 = arith.constant 4 : index
    %92 = memref.load %arg1[%91, %c4_43] : memref<8x8xi32, #tpu.memory_space<smem>>
    %93 = arith.index_cast %92 : i32 to index
    %c0_44 = arith.constant 0 : index
    %94 = vector.load %arg2[%93, %c0_44] : memref<256x32xf32, #tpu.memory_space<vmem>>, vector<1x32xf32>
    %95 = arith.addf %88, %94 : vector<1x32xf32>
    %c8_i32_45 = arith.constant 8 : i32
    %96 = arith.muli %arg0, %c8_i32_45 : i32
    %c1_i32_46 = arith.constant 1 : i32
    %97 = arith.addi %96, %c1_i32_46 : i32
    %98 = arith.index_cast %97 : i32 to index
    %c5_47 = arith.constant 5 : index
    %99 = memref.load %arg1[%98, %c5_47] : memref<8x8xi32, #tpu.memory_space<smem>>
    %100 = arith.index_cast %99 : i32 to index
    %c0_48 = arith.constant 0 : index
    %101 = vector.load %arg2[%100, %c0_48] : memref<256x32xf32, #tpu.memory_space<vmem>>, vector<1x32xf32>
    %102 = arith.addf %95, %101 : vector<1x32xf32>
    %c8_i32_49 = arith.constant 8 : i32
    %103 = arith.muli %arg0, %c8_i32_49 : i32
    %c1_i32_50 = arith.constant 1 : i32
    %104 = arith.addi %103, %c1_i32_50 : i32
    %105 = arith.index_cast %104 : i32 to index
    %c6_51 = arith.constant 6 : index
    %106 = memref.load %arg1[%105, %c6_51] : memref<8x8xi32, #tpu.memory_space<smem>>
    %107 = arith.index_cast %106 : i32 to index
    %c0_52 = arith.constant 0 : index
    %108 = vector.load %arg2[%107, %c0_52] : memref<256x32xf32, #tpu.memory_space<vmem>>, vector<1x32xf32>
    %109 = arith.addf %102, %108 : vector<1x32xf32>
    %c8_i32_53 = arith.constant 8 : i32
    %110 = arith.muli %arg0, %c8_i32_53 : i32
    %c1_i32_54 = arith.constant 1 : i32
    %111 = arith.addi %110, %c1_i32_54 : i32
    %112 = arith.index_cast %111 : i32 to index
    %c7_55 = arith.constant 7 : index
    %113 = memref.load %arg1[%112, %c7_55] : memref<8x8xi32, #tpu.memory_space<smem>>
    %114 = arith.index_cast %113 : i32 to index
    %c0_56 = arith.constant 0 : index
    %115 = vector.load %arg2[%114, %c0_56] : memref<256x32xf32, #tpu.memory_space<vmem>>, vector<1x32xf32>
    %116 = arith.addf %109, %115 : vector<1x32xf32>
    %cst_57 = arith.constant 1.250000e-01 : f32
    %117 = vector.broadcast %cst_57 : f32 to vector<1x32xf32>
    %118 = arith.mulf %116, %117 : vector<1x32xf32>
    %c1_58 = arith.constant 1 : index
    %c0_59 = arith.constant 0 : index
    %119 = vector.load %arg6[%c1_58, %c0_59] : memref<8x32xf32, #tpu.memory_space<vmem>>, vector<1x32xf32>
    tpu.vector_store %arg6[%c1_58, %c0_59], %118 {strides = array<i32>} : memref<8x32xf32, #tpu.memory_space<vmem>>, vector<1x32xf32>,
    %cst_60 = arith.constant 0.000000e+00 : f32
    %120 = vector.broadcast %cst_60 : f32 to vector<1x32xf32>
    %c8_i32_61 = arith.constant 8 : i32
    %121 = arith.muli %arg0, %c8_i32_61 : i32
    %c2_i32 = arith.constant 2 : i32
    %122 = arith.addi %121, %c2_i32 : i32
    %123 = arith.index_cast %122 : i32 to index
    %c0_62 = arith.constant 0 : index
    %124 = memref.load %arg1[%123, %c0_62] : memref<8x8xi32, #tpu.memory_space<smem>>
    %125 = arith.index_cast %124 : i32 to index
    %c0_63 = arith.constant 0 : index
    %126 = vector.load %arg2[%125, %c0_63] : memref<256x32xf32, #tpu.memory_space<vmem>>, vector<1x32xf32>
    %127 = arith.addf %120, %126 : vector<1x32xf32>
    %c8_i32_64 = arith.constant 8 : i32
    %128 = arith.muli %arg0, %c8_i32_64 : i32
    %c2_i32_65 = arith.constant 2 : i32
    %129 = arith.addi %128, %c2_i32_65 : i32
    %130 = arith.index_cast %129 : i32 to index
    %c1_66 = arith.constant 1 : index
    %131 = memref.load %arg1[%130, %c1_66] : memref<8x8xi32, #tpu.memory_space<smem>>
    %132 = arith.index_cast %131 : i32 to index
    %c0_67 = arith.constant 0 : index
    %133 = vector.load %arg2[%132, %c0_67] : memref<256x32xf32, #tpu.memory_space<vmem>>, vector<1x32xf32>
    %134 = arith.addf %127, %133 : vector<1x32xf32>
    %c8_i32_68 = arith.constant 8 : i32
    %135 = arith.muli %arg0, %c8_i32_68 : i32
    %c2_i32_69 = arith.constant 2 : i32
    %136 = arith.addi %135, %c2_i32_69 : i32
    %137 = arith.index_cast %136 : i32 to index
    %c2_70 = arith.constant 2 : index
    %138 = memref.load %arg1[%137, %c2_70] : memref<8x8xi32, #tpu.memory_space<smem>>
    %139 = arith.index_cast %138 : i32 to index
    %c0_71 = arith.constant 0 : index
    %140 = vector.load %arg2[%139, %c0_71] : memref<256x32xf32, #tpu.memory_space<vmem>>, vector<1x32xf32>
    %141 = arith.addf %134, %140 : vector<1x32xf32>
    %c8_i32_72 = arith.constant 8 : i32
    %142 = arith.muli %arg0, %c8_i32_72 : i32
    %c2_i32_73 = arith.constant 2 : i32
    %143 = arith.addi %142, %c2_i32_73 : i32
    %144 = arith.index_cast %143 : i32 to index
    %c3_74 = arith.constant 3 : index
    %145 = memref.load %arg1[%144, %c3_74] : memref<8x8xi32, #tpu.memory_space<smem>>
    %146 = arith.index_cast %145 : i32 to index
    %c0_75 = arith.constant 0 : index
    %147 = vector.load %arg2[%146, %c0_75] : memref<256x32xf32, #tpu.memory_space<vmem>>, vector<1x32xf32>
    %148 = arith.addf %141, %147 : vector<1x32xf32>
    %c8_i32_76 = arith.constant 8 : i32
    %149 = arith.muli %arg0, %c8_i32_76 : i32
    %c2_i32_77 = arith.constant 2 : i32
    %150 = arith.addi %149, %c2_i32_77 : i32
    %151 = arith.index_cast %150 : i32 to index
    %c4_78 = arith.constant 4 : index
    %152 = memref.load %arg1[%151, %c4_78] : memref<8x8xi32, #tpu.memory_space<smem>>
    %153 = arith.index_cast %152 : i32 to index
    %c0_79 = arith.constant 0 : index
    %154 = vector.load %arg2[%153, %c0_79] : memref<256x32xf32, #tpu.memory_space<vmem>>, vector<1x32xf32>
    %155 = arith.addf %148, %154 : vector<1x32xf32>
    %c8_i32_80 = arith.constant 8 : i32
    %156 = arith.muli %arg0, %c8_i32_80 : i32
    %c2_i32_81 = arith.constant 2 : i32
    %157 = arith.addi %156, %c2_i32_81 : i32
    %158 = arith.index_cast %157 : i32 to index
    %c5_82 = arith.constant 5 : index
    %159 = memref.load %arg1[%158, %c5_82] : memref<8x8xi32, #tpu.memory_space<smem>>
    %160 = arith.index_cast %159 : i32 to index
    %c0_83 = arith.constant 0 : index
    %161 = vector.load %arg2[%160, %c0_83] : memref<256x32xf32, #tpu.memory_space<vmem>>, vector<1x32xf32>
    %162 = arith.addf %155, %161 : vector<1x32xf32>
    %c8_i32_84 = arith.constant 8 : i32
    %163 = arith.muli %arg0, %c8_i32_84 : i32
    %c2_i32_85 = arith.constant 2 : i32
    %164 = arith.addi %163, %c2_i32_85 : i32
    %165 = arith.index_cast %164 : i32 to index
    %c6_86 = arith.constant 6 : index
    %166 = memref.load %arg1[%165, %c6_86] : memref<8x8xi32, #tpu.memory_space<smem>>
    %167 = arith.index_cast %166 : i32 to index
    %c0_87 = arith.constant 0 : index
    %168 = vector.load %arg2[%167, %c0_87] : memref<256x32xf32, #tpu.memory_space<vmem>>, vector<1x32xf32>
    %169 = arith.addf %162, %168 : vector<1x32xf32>
    %c8_i32_88 = arith.constant 8 : i32
    %170 = arith.muli %arg0, %c8_i32_88 : i32
    %c2_i32_89 = arith.constant 2 : i32
    %171 = arith.addi %170, %c2_i32_89 : i32
    %172 = arith.index_cast %171 : i32 to index
    %c7_90 = arith.constant 7 : index
    %173 = memref.load %arg1[%172, %c7_90] : memref<8x8xi32, #tpu.memory_space<smem>>
    %174 = arith.index_cast %173 : i32 to index
    %c0_91 = arith.constant 0 : index
    %175 = vector.load %arg2[%174, %c0_91] : memref<256x32xf32, #tpu.memory_space<vmem>>, vector<1x32xf32>
    %176 = arith.addf %169, %175 : vector<1x32xf32>
    %cst_92 = arith.constant 1.250000e-01 : f32
    %177 = vector.broadcast %cst_92 : f32 to vector<1x32xf32>
    %178 = arith.mulf %176, %177 : vector<1x32xf32>
    %c2_93 = arith.constant 2 : index
    %c0_94 = arith.constant 0 : index
    %179 = vector.load %arg6[%c2_93, %c0_94] : memref<8x32xf32, #tpu.memory_space<vmem>>, vector<1x32xf32>
    tpu.vector_store %arg6[%c2_93, %c0_94], %178 {strides = array<i32>} : memref<8x32xf32, #tpu.memory_space<vmem>>, vector<1x32xf32>,
    %cst_95 = arith.constant 0.000000e+00 : f32
    %180 = vector.broadcast %cst_95 : f32 to vector<1x32xf32>
    %c8_i32_96 = arith.constant 8 : i32
    %181 = arith.muli %arg0, %c8_i32_96 : i32
    %c3_i32 = arith.constant 3 : i32
    %182 = arith.addi %181, %c3_i32 : i32
    %183 = arith.index_cast %182 : i32 to index
    %c0_97 = arith.constant 0 : index
    %184 = memref.load %arg1[%183, %c0_97] : memref<8x8xi32, #tpu.memory_space<smem>>
    %185 = arith.index_cast %184 : i32 to index
    %c0_98 = arith.constant 0 : index
    %186 = vector.load %arg2[%185, %c0_98] : memref<256x32xf32, #tpu.memory_space<vmem>>, vector<1x32xf32>
    %187 = arith.addf %180, %186 : vector<1x32xf32>
    %c8_i32_99 = arith.constant 8 : i32
    %188 = arith.muli %arg0, %c8_i32_99 : i32
    %c3_i32_100 = arith.constant 3 : i32
    %189 = arith.addi %188, %c3_i32_100 : i32
    %190 = arith.index_cast %189 : i32 to index
    %c1_101 = arith.constant 1 : index
    %191 = memref.load %arg1[%190, %c1_101] : memref<8x8xi32, #tpu.memory_space<smem>>
    %192 = arith.index_cast %191 : i32 to index
    %c0_102 = arith.constant 0 : index
    %193 = vector.load %arg2[%192, %c0_102] : memref<256x32xf32, #tpu.memory_space<vmem>>, vector<1x32xf32>
    %194 = arith.addf %187, %193 : vector<1x32xf32>
    %c8_i32_103 = arith.constant 8 : i32
    %195 = arith.muli %arg0, %c8_i32_103 : i32
    %c3_i32_104 = arith.constant 3 : i32
    %196 = arith.addi %195, %c3_i32_104 : i32
    %197 = arith.index_cast %196 : i32 to index
    %c2_105 = arith.constant 2 : index
    %198 = memref.load %arg1[%197, %c2_105] : memref<8x8xi32, #tpu.memory_space<smem>>
    %199 = arith.index_cast %198 : i32 to index
    %c0_106 = arith.constant 0 : index
    %200 = vector.load %arg2[%199, %c0_106] : memref<256x32xf32, #tpu.memory_space<vmem>>, vector<1x32xf32>
    %201 = arith.addf %194, %200 : vector<1x32xf32>
    %c8_i32_107 = arith.constant 8 : i32
    %202 = arith.muli %arg0, %c8_i32_107 : i32
    %c3_i32_108 = arith.constant 3 : i32
    %203 = arith.addi %202, %c3_i32_108 : i32
    %204 = arith.index_cast %203 : i32 to index
    %c3_109 = arith.constant 3 : index
    %205 = memref.load %arg1[%204, %c3_109] : memref<8x8xi32, #tpu.memory_space<smem>>
    %206 = arith.index_cast %205 : i32 to index
    %c0_110 = arith.constant 0 : index
    %207 = vector.load %arg2[%206, %c0_110] : memref<256x32xf32, #tpu.memory_space<vmem>>, vector<1x32xf32>
    %208 = arith.addf %201, %207 : vector<1x32xf32>
    %c8_i32_111 = arith.constant 8 : i32
    %209 = arith.muli %arg0, %c8_i32_111 : i32
    %c3_i32_112 = arith.constant 3 : i32
    %210 = arith.addi %209, %c3_i32_112 : i32
    %211 = arith.index_cast %210 : i32 to index
    %c4_113 = arith.constant 4 : index
    %212 = memref.load %arg1[%211, %c4_113] : memref<8x8xi32, #tpu.memory_space<smem>>
    %213 = arith.index_cast %212 : i32 to index
    %c0_114 = arith.constant 0 : index
    %214 = vector.load %arg2[%213, %c0_114] : memref<256x32xf32, #tpu.memory_space<vmem>>, vector<1x32xf32>
    %215 = arith.addf %208, %214 : vector<1x32xf32>
    %c8_i32_115 = arith.constant 8 : i32
    %216 = arith.muli %arg0, %c8_i32_115 : i32
    %c3_i32_116 = arith.constant 3 : i32
    %217 = arith.addi %216, %c3_i32_116 : i32
    %218 = arith.index_cast %217 : i32 to index
    %c5_117 = arith.constant 5 : index
    %219 = memref.load %arg1[%218, %c5_117] : memref<8x8xi32, #tpu.memory_space<smem>>
    %220 = arith.index_cast %219 : i32 to index
    %c0_118 = arith.constant 0 : index
    %221 = vector.load %arg2[%220, %c0_118] : memref<256x32xf32, #tpu.memory_space<vmem>>, vector<1x32xf32>
    %222 = arith.addf %215, %221 : vector<1x32xf32>
    %c8_i32_119 = arith.constant 8 : i32
    %223 = arith.muli %arg0, %c8_i32_119 : i32
    %c3_i32_120 = arith.constant 3 : i32
    %224 = arith.addi %223, %c3_i32_120 : i32
    %225 = arith.index_cast %224 : i32 to index
    %c6_121 = arith.constant 6 : index
    %226 = memref.load %arg1[%225, %c6_121] : memref<8x8xi32, #tpu.memory_space<smem>>
    %227 = arith.index_cast %226 : i32 to index
    %c0_122 = arith.constant 0 : index
    %228 = vector.load %arg2[%227, %c0_122] : memref<256x32xf32, #tpu.memory_space<vmem>>, vector<1x32xf32>
    %229 = arith.addf %222, %228 : vector<1x32xf32>
    %c8_i32_123 = arith.constant 8 : i32
    %230 = arith.muli %arg0, %c8_i32_123 : i32
    %c3_i32_124 = arith.constant 3 : i32
    %231 = arith.addi %230, %c3_i32_124 : i32
    %232 = arith.index_cast %231 : i32 to index
    %c7_125 = arith.constant 7 : index
    %233 = memref.load %arg1[%232, %c7_125] : memref<8x8xi32, #tpu.memory_space<smem>>
    %234 = arith.index_cast %233 : i32 to index
    %c0_126 = arith.constant 0 : index
    %235 = vector.load %arg2[%234, %c0_126] : memref<256x32xf32, #tpu.memory_space<vmem>>, vector<1x32xf32>
    %236 = arith.addf %229, %235 : vector<1x32xf32>
    %cst_127 = arith.constant 1.250000e-01 : f32
    %237 = vector.broadcast %cst_127 : f32 to vector<1x32xf32>
    %238 = arith.mulf %236, %237 : vector<1x32xf32>
    %c3_128 = arith.constant 3 : index
    %c0_129 = arith.constant 0 : index
    %239 = vector.load %arg6[%c3_128, %c0_129] : memref<8x32xf32, #tpu.memory_space<vmem>>, vector<1x32xf32>
    tpu.vector_store %arg6[%c3_128, %c0_129], %238 {strides = array<i32>} : memref<8x32xf32, #tpu.memory_space<vmem>>, vector<1x32xf32>,
    %cst_130 = arith.constant 0.000000e+00 : f32
    %240 = vector.broadcast %cst_130 : f32 to vector<1x32xf32>
    %c8_i32_131 = arith.constant 8 : i32
    %241 = arith.muli %arg0, %c8_i32_131 : i32
    %c4_i32 = arith.constant 4 : i32
    %242 = arith.addi %241, %c4_i32 : i32
    %243 = arith.index_cast %242 : i32 to index
    %c0_132 = arith.constant 0 : index
    %244 = memref.load %arg1[%243, %c0_132] : memref<8x8xi32, #tpu.memory_space<smem>>
    %245 = arith.index_cast %244 : i32 to index
    %c0_133 = arith.constant 0 : index
    %246 = vector.load %arg2[%245, %c0_133] : memref<256x32xf32, #tpu.memory_space<vmem>>, vector<1x32xf32>
    %247 = arith.addf %240, %246 : vector<1x32xf32>
    %c8_i32_134 = arith.constant 8 : i32
    %248 = arith.muli %arg0, %c8_i32_134 : i32
    %c4_i32_135 = arith.constant 4 : i32
    %249 = arith.addi %248, %c4_i32_135 : i32
    %250 = arith.index_cast %249 : i32 to index
    %c1_136 = arith.constant 1 : index
    %251 = memref.load %arg1[%250, %c1_136] : memref<8x8xi32, #tpu.memory_space<smem>>
    %252 = arith.index_cast %251 : i32 to index
    %c0_137 = arith.constant 0 : index
    %253 = vector.load %arg2[%252, %c0_137] : memref<256x32xf32, #tpu.memory_space<vmem>>, vector<1x32xf32>
    %254 = arith.addf %247, %253 : vector<1x32xf32>
    %c8_i32_138 = arith.constant 8 : i32
    %255 = arith.muli %arg0, %c8_i32_138 : i32
    %c4_i32_139 = arith.constant 4 : i32
    %256 = arith.addi %255, %c4_i32_139 : i32
    %257 = arith.index_cast %256 : i32 to index
    %c2_140 = arith.constant 2 : index
    %258 = memref.load %arg1[%257, %c2_140] : memref<8x8xi32, #tpu.memory_space<smem>>
    %259 = arith.index_cast %258 : i32 to index
    %c0_141 = arith.constant 0 : index
    %260 = vector.load %arg2[%259, %c0_141] : memref<256x32xf32, #tpu.memory_space<vmem>>, vector<1x32xf32>
    %261 = arith.addf %254, %260 : vector<1x32xf32>
    %c8_i32_142 = arith.constant 8 : i32
    %262 = arith.muli %arg0, %c8_i32_142 : i32
    %c4_i32_143 = arith.constant 4 : i32
    %263 = arith.addi %262, %c4_i32_143 : i32
    %264 = arith.index_cast %263 : i32 to index
    %c3_144 = arith.constant 3 : index
    %265 = memref.load %arg1[%264, %c3_144] : memref<8x8xi32, #tpu.memory_space<smem>>
    %266 = arith.index_cast %265 : i32 to index
    %c0_145 = arith.constant 0 : index
    %267 = vector.load %arg2[%266, %c0_145] : memref<256x32xf32, #tpu.memory_space<vmem>>, vector<1x32xf32>
    %268 = arith.addf %261, %267 : vector<1x32xf32>
    %c8_i32_146 = arith.constant 8 : i32
    %269 = arith.muli %arg0, %c8_i32_146 : i32
    %c4_i32_147 = arith.constant 4 : i32
    %270 = arith.addi %269, %c4_i32_147 : i32
    %271 = arith.index_cast %270 : i32 to index
    %c4_148 = arith.constant 4 : index
    %272 = memref.load %arg1[%271, %c4_148] : memref<8x8xi32, #tpu.memory_space<smem>>
    %273 = arith.index_cast %272 : i32 to index
    %c0_149 = arith.constant 0 : index
    %274 = vector.load %arg2[%273, %c0_149] : memref<256x32xf32, #tpu.memory_space<vmem>>, vector<1x32xf32>
    %275 = arith.addf %268, %274 : vector<1x32xf32>
    %c8_i32_150 = arith.constant 8 : i32
    %276 = arith.muli %arg0, %c8_i32_150 : i32
    %c4_i32_151 = arith.constant 4 : i32
    %277 = arith.addi %276, %c4_i32_151 : i32
    %278 = arith.index_cast %277 : i32 to index
    %c5_152 = arith.constant 5 : index
    %279 = memref.load %arg1[%278, %c5_152] : memref<8x8xi32, #tpu.memory_space<smem>>
    %280 = arith.index_cast %279 : i32 to index
    %c0_153 = arith.constant 0 : index
    %281 = vector.load %arg2[%280, %c0_153] : memref<256x32xf32, #tpu.memory_space<vmem>>, vector<1x32xf32>
    %282 = arith.addf %275, %281 : vector<1x32xf32>
    %c8_i32_154 = arith.constant 8 : i32
    %283 = arith.muli %arg0, %c8_i32_154 : i32
    %c4_i32_155 = arith.constant 4 : i32
    %284 = arith.addi %283, %c4_i32_155 : i32
    %285 = arith.index_cast %284 : i32 to index
    %c6_156 = arith.constant 6 : index
    %286 = memref.load %arg1[%285, %c6_156] : memref<8x8xi32, #tpu.memory_space<smem>>
    %287 = arith.index_cast %286 : i32 to index
    %c0_157 = arith.constant 0 : index
    %288 = vector.load %arg2[%287, %c0_157] : memref<256x32xf32, #tpu.memory_space<vmem>>, vector<1x32xf32>
    %289 = arith.addf %282, %288 : vector<1x32xf32>
    %c8_i32_158 = arith.constant 8 : i32
    %290 = arith.muli %arg0, %c8_i32_158 : i32
    %c4_i32_159 = arith.constant 4 : i32
    %291 = arith.addi %290, %c4_i32_159 : i32
    %292 = arith.index_cast %291 : i32 to index
    %c7_160 = arith.constant 7 : index
    %293 = memref.load %arg1[%292, %c7_160] : memref<8x8xi32, #tpu.memory_space<smem>>
    %294 = arith.index_cast %293 : i32 to index
    %c0_161 = arith.constant 0 : index
    %295 = vector.load %arg2[%294, %c0_161] : memref<256x32xf32, #tpu.memory_space<vmem>>, vector<1x32xf32>
    %296 = arith.addf %289, %295 : vector<1x32xf32>
    %cst_162 = arith.constant 1.250000e-01 : f32
    %297 = vector.broadcast %cst_162 : f32 to vector<1x32xf32>
    %298 = arith.mulf %296, %297 : vector<1x32xf32>
    %c4_163 = arith.constant 4 : index
    %c0_164 = arith.constant 0 : index
    %299 = vector.load %arg6[%c4_163, %c0_164] : memref<8x32xf32, #tpu.memory_space<vmem>>, vector<1x32xf32>
    tpu.vector_store %arg6[%c4_163, %c0_164], %298 {strides = array<i32>} : memref<8x32xf32, #tpu.memory_space<vmem>>, vector<1x32xf32>,
    %cst_165 = arith.constant 0.000000e+00 : f32
    %300 = vector.broadcast %cst_165 : f32 to vector<1x32xf32>
    %c8_i32_166 = arith.constant 8 : i32
    %301 = arith.muli %arg0, %c8_i32_166 : i32
    %c5_i32 = arith.constant 5 : i32
    %302 = arith.addi %301, %c5_i32 : i32
    %303 = arith.index_cast %302 : i32 to index
    %c0_167 = arith.constant 0 : index
    %304 = memref.load %arg1[%303, %c0_167] : memref<8x8xi32, #tpu.memory_space<smem>>
    %305 = arith.index_cast %304 : i32 to index
    %c0_168 = arith.constant 0 : index
    %306 = vector.load %arg2[%305, %c0_168] : memref<256x32xf32, #tpu.memory_space<vmem>>, vector<1x32xf32>
    %307 = arith.addf %300, %306 : vector<1x32xf32>
    %c8_i32_169 = arith.constant 8 : i32
    %308 = arith.muli %arg0, %c8_i32_169 : i32
    %c5_i32_170 = arith.constant 5 : i32
    %309 = arith.addi %308, %c5_i32_170 : i32
    %310 = arith.index_cast %309 : i32 to index
    %c1_171 = arith.constant 1 : index
    %311 = memref.load %arg1[%310, %c1_171] : memref<8x8xi32, #tpu.memory_space<smem>>
    %312 = arith.index_cast %311 : i32 to index
    %c0_172 = arith.constant 0 : index
    %313 = vector.load %arg2[%312, %c0_172] : memref<256x32xf32, #tpu.memory_space<vmem>>, vector<1x32xf32>
    %314 = arith.addf %307, %313 : vector<1x32xf32>
    %c8_i32_173 = arith.constant 8 : i32
    %315 = arith.muli %arg0, %c8_i32_173 : i32
    %c5_i32_174 = arith.constant 5 : i32
    %316 = arith.addi %315, %c5_i32_174 : i32
    %317 = arith.index_cast %316 : i32 to index
    %c2_175 = arith.constant 2 : index
    %318 = memref.load %arg1[%317, %c2_175] : memref<8x8xi32, #tpu.memory_space<smem>>
    %319 = arith.index_cast %318 : i32 to index
    %c0_176 = arith.constant 0 : index
    %320 = vector.load %arg2[%319, %c0_176] : memref<256x32xf32, #tpu.memory_space<vmem>>, vector<1x32xf32>
    %321 = arith.addf %314, %320 : vector<1x32xf32>
    %c8_i32_177 = arith.constant 8 : i32
    %322 = arith.muli %arg0, %c8_i32_177 : i32
    %c5_i32_178 = arith.constant 5 : i32
    %323 = arith.addi %322, %c5_i32_178 : i32
    %324 = arith.index_cast %323 : i32 to index
    %c3_179 = arith.constant 3 : index
    %325 = memref.load %arg1[%324, %c3_179] : memref<8x8xi32, #tpu.memory_space<smem>>
    %326 = arith.index_cast %325 : i32 to index
    %c0_180 = arith.constant 0 : index
    %327 = vector.load %arg2[%326, %c0_180] : memref<256x32xf32, #tpu.memory_space<vmem>>, vector<1x32xf32>
    %328 = arith.addf %321, %327 : vector<1x32xf32>
    %c8_i32_181 = arith.constant 8 : i32
    %329 = arith.muli %arg0, %c8_i32_181 : i32
    %c5_i32_182 = arith.constant 5 : i32
    %330 = arith.addi %329, %c5_i32_182 : i32
    %331 = arith.index_cast %330 : i32 to index
    %c4_183 = arith.constant 4 : index
    %332 = memref.load %arg1[%331, %c4_183] : memref<8x8xi32, #tpu.memory_space<smem>>
    %333 = arith.index_cast %332 : i32 to index
    %c0_184 = arith.constant 0 : index
    %334 = vector.load %arg2[%333, %c0_184] : memref<256x32xf32, #tpu.memory_space<vmem>>, vector<1x32xf32>
    %335 = arith.addf %328, %334 : vector<1x32xf32>
    %c8_i32_185 = arith.constant 8 : i32
    %336 = arith.muli %arg0, %c8_i32_185 : i32
    %c5_i32_186 = arith.constant 5 : i32
    %337 = arith.addi %336, %c5_i32_186 : i32
    %338 = arith.index_cast %337 : i32 to index
    %c5_187 = arith.constant 5 : index
    %339 = memref.load %arg1[%338, %c5_187] : memref<8x8xi32, #tpu.memory_space<smem>>
    %340 = arith.index_cast %339 : i32 to index
    %c0_188 = arith.constant 0 : index
    %341 = vector.load %arg2[%340, %c0_188] : memref<256x32xf32, #tpu.memory_space<vmem>>, vector<1x32xf32>
    %342 = arith.addf %335, %341 : vector<1x32xf32>
    %c8_i32_189 = arith.constant 8 : i32
    %343 = arith.muli %arg0, %c8_i32_189 : i32
    %c5_i32_190 = arith.constant 5 : i32
    %344 = arith.addi %343, %c5_i32_190 : i32
    %345 = arith.index_cast %344 : i32 to index
    %c6_191 = arith.constant 6 : index
    %346 = memref.load %arg1[%345, %c6_191] : memref<8x8xi32, #tpu.memory_space<smem>>
    %347 = arith.index_cast %346 : i32 to index
    %c0_192 = arith.constant 0 : index
    %348 = vector.load %arg2[%347, %c0_192] : memref<256x32xf32, #tpu.memory_space<vmem>>, vector<1x32xf32>
    %349 = arith.addf %342, %348 : vector<1x32xf32>
    %c8_i32_193 = arith.constant 8 : i32
    %350 = arith.muli %arg0, %c8_i32_193 : i32
    %c5_i32_194 = arith.constant 5 : i32
    %351 = arith.addi %350, %c5_i32_194 : i32
    %352 = arith.index_cast %351 : i32 to index
    %c7_195 = arith.constant 7 : index
    %353 = memref.load %arg1[%352, %c7_195] : memref<8x8xi32, #tpu.memory_space<smem>>
    %354 = arith.index_cast %353 : i32 to index
    %c0_196 = arith.constant 0 : index
    %355 = vector.load %arg2[%354, %c0_196] : memref<256x32xf32, #tpu.memory_space<vmem>>, vector<1x32xf32>
    %356 = arith.addf %349, %355 : vector<1x32xf32>
    %cst_197 = arith.constant 1.250000e-01 : f32
    %357 = vector.broadcast %cst_197 : f32 to vector<1x32xf32>
    %358 = arith.mulf %356, %357 : vector<1x32xf32>
    %c5_198 = arith.constant 5 : index
    %c0_199 = arith.constant 0 : index
    %359 = vector.load %arg6[%c5_198, %c0_199] : memref<8x32xf32, #tpu.memory_space<vmem>>, vector<1x32xf32>
    tpu.vector_store %arg6[%c5_198, %c0_199], %358 {strides = array<i32>} : memref<8x32xf32, #tpu.memory_space<vmem>>, vector<1x32xf32>,
    %cst_200 = arith.constant 0.000000e+00 : f32
    %360 = vector.broadcast %cst_200 : f32 to vector<1x32xf32>
    %c8_i32_201 = arith.constant 8 : i32
    %361 = arith.muli %arg0, %c8_i32_201 : i32
    %c6_i32 = arith.constant 6 : i32
    %362 = arith.addi %361, %c6_i32 : i32
    %363 = arith.index_cast %362 : i32 to index
    %c0_202 = arith.constant 0 : index
    %364 = memref.load %arg1[%363, %c0_202] : memref<8x8xi32, #tpu.memory_space<smem>>
    %365 = arith.index_cast %364 : i32 to index
    %c0_203 = arith.constant 0 : index
    %366 = vector.load %arg2[%365, %c0_203] : memref<256x32xf32, #tpu.memory_space<vmem>>, vector<1x32xf32>
    %367 = arith.addf %360, %366 : vector<1x32xf32>
    %c8_i32_204 = arith.constant 8 : i32
    %368 = arith.muli %arg0, %c8_i32_204 : i32
    %c6_i32_205 = arith.constant 6 : i32
    %369 = arith.addi %368, %c6_i32_205 : i32
    %370 = arith.index_cast %369 : i32 to index
    %c1_206 = arith.constant 1 : index
    %371 = memref.load %arg1[%370, %c1_206] : memref<8x8xi32, #tpu.memory_space<smem>>
    %372 = arith.index_cast %371 : i32 to index
    %c0_207 = arith.constant 0 : index
    %373 = vector.load %arg2[%372, %c0_207] : memref<256x32xf32, #tpu.memory_space<vmem>>, vector<1x32xf32>
    %374 = arith.addf %367, %373 : vector<1x32xf32>
    %c8_i32_208 = arith.constant 8 : i32
    %375 = arith.muli %arg0, %c8_i32_208 : i32
    %c6_i32_209 = arith.constant 6 : i32
    %376 = arith.addi %375, %c6_i32_209 : i32
    %377 = arith.index_cast %376 : i32 to index
    %c2_210 = arith.constant 2 : index
    %378 = memref.load %arg1[%377, %c2_210] : memref<8x8xi32, #tpu.memory_space<smem>>
    %379 = arith.index_cast %378 : i32 to index
    %c0_211 = arith.constant 0 : index
    %380 = vector.load %arg2[%379, %c0_211] : memref<256x32xf32, #tpu.memory_space<vmem>>, vector<1x32xf32>
    %381 = arith.addf %374, %380 : vector<1x32xf32>
    %c8_i32_212 = arith.constant 8 : i32
    %382 = arith.muli %arg0, %c8_i32_212 : i32
    %c6_i32_213 = arith.constant 6 : i32
    %383 = arith.addi %382, %c6_i32_213 : i32
    %384 = arith.index_cast %383 : i32 to index
    %c3_214 = arith.constant 3 : index
    %385 = memref.load %arg1[%384, %c3_214] : memref<8x8xi32, #tpu.memory_space<smem>>
    %386 = arith.index_cast %385 : i32 to index
    %c0_215 = arith.constant 0 : index
    %387 = vector.load %arg2[%386, %c0_215] : memref<256x32xf32, #tpu.memory_space<vmem>>, vector<1x32xf32>
    %388 = arith.addf %381, %387 : vector<1x32xf32>
    %c8_i32_216 = arith.constant 8 : i32
    %389 = arith.muli %arg0, %c8_i32_216 : i32
    %c6_i32_217 = arith.constant 6 : i32
    %390 = arith.addi %389, %c6_i32_217 : i32
    %391 = arith.index_cast %390 : i32 to index
    %c4_218 = arith.constant 4 : index
    %392 = memref.load %arg1[%391, %c4_218] : memref<8x8xi32, #tpu.memory_space<smem>>
    %393 = arith.index_cast %392 : i32 to index
    %c0_219 = arith.constant 0 : index
    %394 = vector.load %arg2[%393, %c0_219] : memref<256x32xf32, #tpu.memory_space<vmem>>, vector<1x32xf32>
    %395 = arith.addf %388, %394 : vector<1x32xf32>
    %c8_i32_220 = arith.constant 8 : i32
    %396 = arith.muli %arg0, %c8_i32_220 : i32
    %c6_i32_221 = arith.constant 6 : i32
    %397 = arith.addi %396, %c6_i32_221 : i32
    %398 = arith.index_cast %397 : i32 to index
    %c5_222 = arith.constant 5 : index
    %399 = memref.load %arg1[%398, %c5_222] : memref<8x8xi32, #tpu.memory_space<smem>>
    %400 = arith.index_cast %399 : i32 to index
    %c0_223 = arith.constant 0 : index
    %401 = vector.load %arg2[%400, %c0_223] : memref<256x32xf32, #tpu.memory_space<vmem>>, vector<1x32xf32>
    %402 = arith.addf %395, %401 : vector<1x32xf32>
    %c8_i32_224 = arith.constant 8 : i32
    %403 = arith.muli %arg0, %c8_i32_224 : i32
    %c6_i32_225 = arith.constant 6 : i32
    %404 = arith.addi %403, %c6_i32_225 : i32
    %405 = arith.index_cast %404 : i32 to index
    %c6_226 = arith.constant 6 : index
    %406 = memref.load %arg1[%405, %c6_226] : memref<8x8xi32, #tpu.memory_space<smem>>
    %407 = arith.index_cast %406 : i32 to index
    %c0_227 = arith.constant 0 : index
    %408 = vector.load %arg2[%407, %c0_227] : memref<256x32xf32, #tpu.memory_space<vmem>>, vector<1x32xf32>
    %409 = arith.addf %402, %408 : vector<1x32xf32>
    %c8_i32_228 = arith.constant 8 : i32
    %410 = arith.muli %arg0, %c8_i32_228 : i32
    %c6_i32_229 = arith.constant 6 : i32
    %411 = arith.addi %410, %c6_i32_229 : i32
    %412 = arith.index_cast %411 : i32 to index
    %c7_230 = arith.constant 7 : index
    %413 = memref.load %arg1[%412, %c7_230] : memref<8x8xi32, #tpu.memory_space<smem>>
    %414 = arith.index_cast %413 : i32 to index
    %c0_231 = arith.constant 0 : index
    %415 = vector.load %arg2[%414, %c0_231] : memref<256x32xf32, #tpu.memory_space<vmem>>, vector<1x32xf32>
    %416 = arith.addf %409, %415 : vector<1x32xf32>
    %cst_232 = arith.constant 1.250000e-01 : f32
    %417 = vector.broadcast %cst_232 : f32 to vector<1x32xf32>
    %418 = arith.mulf %416, %417 : vector<1x32xf32>
    %c6_233 = arith.constant 6 : index
    %c0_234 = arith.constant 0 : index
    %419 = vector.load %arg6[%c6_233, %c0_234] : memref<8x32xf32, #tpu.memory_space<vmem>>, vector<1x32xf32>
    tpu.vector_store %arg6[%c6_233, %c0_234], %418 {strides = array<i32>} : memref<8x32xf32, #tpu.memory_space<vmem>>, vector<1x32xf32>,
    %cst_235 = arith.constant 0.000000e+00 : f32
    %420 = vector.broadcast %cst_235 : f32 to vector<1x32xf32>
    %c8_i32_236 = arith.constant 8 : i32
    %421 = arith.muli %arg0, %c8_i32_236 : i32
    %c7_i32 = arith.constant 7 : i32
    %422 = arith.addi %421, %c7_i32 : i32
    %423 = arith.index_cast %422 : i32 to index
    %c0_237 = arith.constant 0 : index
    %424 = memref.load %arg1[%423, %c0_237] : memref<8x8xi32, #tpu.memory_space<smem>>
    %425 = arith.index_cast %424 : i32 to index
    %c0_238 = arith.constant 0 : index
    %426 = vector.load %arg2[%425, %c0_238] : memref<256x32xf32, #tpu.memory_space<vmem>>, vector<1x32xf32>
    %427 = arith.addf %420, %426 : vector<1x32xf32>
    %c8_i32_239 = arith.constant 8 : i32
    %428 = arith.muli %arg0, %c8_i32_239 : i32
    %c7_i32_240 = arith.constant 7 : i32
    %429 = arith.addi %428, %c7_i32_240 : i32
    %430 = arith.index_cast %429 : i32 to index
    %c1_241 = arith.constant 1 : index
    %431 = memref.load %arg1[%430, %c1_241] : memref<8x8xi32, #tpu.memory_space<smem>>
    %432 = arith.index_cast %431 : i32 to index
    %c0_242 = arith.constant 0 : index
    %433 = vector.load %arg2[%432, %c0_242] : memref<256x32xf32, #tpu.memory_space<vmem>>, vector<1x32xf32>
    %434 = arith.addf %427, %433 : vector<1x32xf32>
    %c8_i32_243 = arith.constant 8 : i32
    %435 = arith.muli %arg0, %c8_i32_243 : i32
    %c7_i32_244 = arith.constant 7 : i32
    %436 = arith.addi %435, %c7_i32_244 : i32
    %437 = arith.index_cast %436 : i32 to index
    %c2_245 = arith.constant 2 : index
    %438 = memref.load %arg1[%437, %c2_245] : memref<8x8xi32, #tpu.memory_space<smem>>
    %439 = arith.index_cast %438 : i32 to index
    %c0_246 = arith.constant 0 : index
    %440 = vector.load %arg2[%439, %c0_246] : memref<256x32xf32, #tpu.memory_space<vmem>>, vector<1x32xf32>
    %441 = arith.addf %434, %440 : vector<1x32xf32>
    %c8_i32_247 = arith.constant 8 : i32
    %442 = arith.muli %arg0, %c8_i32_247 : i32
    %c7_i32_248 = arith.constant 7 : i32
    %443 = arith.addi %442, %c7_i32_248 : i32
    %444 = arith.index_cast %443 : i32 to index
    %c3_249 = arith.constant 3 : index
    %445 = memref.load %arg1[%444, %c3_249] : memref<8x8xi32, #tpu.memory_space<smem>>
    %446 = arith.index_cast %445 : i32 to index
    %c0_250 = arith.constant 0 : index
    %447 = vector.load %arg2[%446, %c0_250] : memref<256x32xf32, #tpu.memory_space<vmem>>, vector<1x32xf32>
    %448 = arith.addf %441, %447 : vector<1x32xf32>
    %c8_i32_251 = arith.constant 8 : i32
    %449 = arith.muli %arg0, %c8_i32_251 : i32
    %c7_i32_252 = arith.constant 7 : i32
    %450 = arith.addi %449, %c7_i32_252 : i32
    %451 = arith.index_cast %450 : i32 to index
    %c4_253 = arith.constant 4 : index
    %452 = memref.load %arg1[%451, %c4_253] : memref<8x8xi32, #tpu.memory_space<smem>>
    %453 = arith.index_cast %452 : i32 to index
    %c0_254 = arith.constant 0 : index
    %454 = vector.load %arg2[%453, %c0_254] : memref<256x32xf32, #tpu.memory_space<vmem>>, vector<1x32xf32>
    %455 = arith.addf %448, %454 : vector<1x32xf32>
    %c8_i32_255 = arith.constant 8 : i32
    %456 = arith.muli %arg0, %c8_i32_255 : i32
    %c7_i32_256 = arith.constant 7 : i32
    %457 = arith.addi %456, %c7_i32_256 : i32
    %458 = arith.index_cast %457 : i32 to index
    %c5_257 = arith.constant 5 : index
    %459 = memref.load %arg1[%458, %c5_257] : memref<8x8xi32, #tpu.memory_space<smem>>
    %460 = arith.index_cast %459 : i32 to index
    %c0_258 = arith.constant 0 : index
    %461 = vector.load %arg2[%460, %c0_258] : memref<256x32xf32, #tpu.memory_space<vmem>>, vector<1x32xf32>
    %462 = arith.addf %455, %461 : vector<1x32xf32>
    %c8_i32_259 = arith.constant 8 : i32
    %463 = arith.muli %arg0, %c8_i32_259 : i32
    %c7_i32_260 = arith.constant 7 : i32
    %464 = arith.addi %463, %c7_i32_260 : i32
    %465 = arith.index_cast %464 : i32 to index
    %c6_261 = arith.constant 6 : index
    %466 = memref.load %arg1[%465, %c6_261] : memref<8x8xi32, #tpu.memory_space<smem>>
    %467 = arith.index_cast %466 : i32 to index
    %c0_262 = arith.constant 0 : index
    %468 = vector.load %arg2[%467, %c0_262] : memref<256x32xf32, #tpu.memory_space<vmem>>, vector<1x32xf32>
    %469 = arith.addf %462, %468 : vector<1x32xf32>
    %c8_i32_263 = arith.constant 8 : i32
    %470 = arith.muli %arg0, %c8_i32_263 : i32
    %c7_i32_264 = arith.constant 7 : i32
    %471 = arith.addi %470, %c7_i32_264 : i32
    %472 = arith.index_cast %471 : i32 to index
    %c7_265 = arith.constant 7 : index
    %473 = memref.load %arg1[%472, %c7_265] : memref<8x8xi32, #tpu.memory_space<smem>>
    %474 = arith.index_cast %473 : i32 to index
    %c0_266 = arith.constant 0 : index
    %475 = vector.load %arg2[%474, %c0_266] : memref<256x32xf32, #tpu.memory_space<vmem>>, vector<1x32xf32>
    %476 = arith.addf %469, %475 : vector<1x32xf32>
    %cst_267 = arith.constant 1.250000e-01 : f32
    %477 = vector.broadcast %cst_267 : f32 to vector<1x32xf32>
    %478 = arith.mulf %476, %477 : vector<1x32xf32>
    %c7_268 = arith.constant 7 : index
    %c0_269 = arith.constant 0 : index
    %479 = vector.load %arg6[%c7_268, %c0_269] : memref<8x32xf32, #tpu.memory_space<vmem>>, vector<1x32xf32>
    tpu.vector_store %arg6[%c7_268, %c0_269], %478 {strides = array<i32>} : memref<8x32xf32, #tpu.memory_space<vmem>>, vector<1x32xf32>,
    %c0_270 = arith.constant 0 : index
    %c0_271 = arith.constant 0 : index
    %480 = vector.load %arg6[%c0_270, %c0_271] : memref<8x32xf32, #tpu.memory_space<vmem>>, vector<8x32xf32>
    %c0_272 = arith.constant 0 : index
    %c0_273 = arith.constant 0 : index
    %481 = vector.load %arg3[%c0_272, %c0_273] : memref<32x128xf32, #tpu.memory_space<vmem>>, vector<32x128xf32>
    %cst_274 = arith.constant dense<0.000000e+00> : vector<8x128xf32>
    %482 = tpu.matmul %480, %481, %cst_274 {dimension_numbers = #tpu.dot_dimension_numbers<[1], [0], [0], [1], [0, 0, 1, 1], [], []>} : vector<8x32xf32>, vector<32x128xf32>, vector<8x128xf32> -> vector<8x128xf32>
    %c0_275 = arith.constant 0 : index
    %c0_276 = arith.constant 0 : index
    %483 = vector.load %arg4[%c0_275, %c0_276] : memref<1x128xf32, #tpu.memory_space<vmem>>, vector<1x128xf32>
    %484 = vector.broadcast %483 : vector<1x128xf32> to vector<8x128xf32>
    %485 = arith.addf %482, %484 : vector<8x128xf32>
    %cst_277 = arith.constant dense<0xFF800000> : vector<8xf32>
    %486 = vector.multi_reduction <maximumf>, %485, %cst_277 [1] : vector<8x128xf32> to vector<8xf32>
    %487 = vector.shape_cast %486 : vector<8xf32> to vector<8x1xf32>
    %488 = vector.broadcast %487 : vector<8x1xf32> to vector<8x128xf32>
    %489 = arith.subf %485, %488 : vector<8x128xf32>
    %490 = math.exp %489 : vector<8x128xf32>
    %cst_278 = arith.constant dense<0.000000e+00> : vector<8xf32>
    %491 = vector.multi_reduction <add>, %490, %cst_278 [1] : vector<8x128xf32> to vector<8xf32>
    %492 = vector.shape_cast %491 : vector<8xf32> to vector<8x1xf32>
    %493 = vector.broadcast %492 : vector<8x1xf32> to vector<8x128xf32>
    %494 = arith.divf %490, %493 : vector<8x128xf32>
    %c0_279 = arith.constant 0 : index
    %c0_280 = arith.constant 0 : index
    %495 = vector.load %arg5[%c0_279, %c0_280] : memref<8x128xf32, #tpu.memory_space<vmem>>, vector<8x128xf32>
    tpu.vector_store %arg5[%c0_279, %c0_280], %494 {strides = array<i32>} : memref<8x128xf32, #tpu.memory_space<vmem>>, vector<8x128xf32>,
    return
  }
  func.func @transform_0(%arg0: i32, %arg1: memref<8x8xi32, #tpu.memory_space<smem>>) -> (i32, i32) {
    %c0_i32 = arith.constant 0 : i32
    %c0_i32_0 = arith.constant 0 : i32
    %c0_i32_1 = arith.constant 0 : i32
    return %c0_i32, %c0_i32_0 : i32, i32
  }
  func.func @transform_1(%arg0: i32, %arg1: memref<8x8xi32, #tpu.memory_space<smem>>) -> (i32, i32) {
    %c0_i32 = arith.constant 0 : i32
    %c0_i32_0 = arith.constant 0 : i32
    %c0_i32_1 = arith.constant 0 : i32
    return %c0_i32, %c0_i32_0 : i32, i32
  }
  func.func @transform_2(%arg0: i32, %arg1: memref<8x8xi32, #tpu.memory_space<smem>>) -> (i32, i32) {
    %c0_i32 = arith.constant 0 : i32
    %c0_i32_0 = arith.constant 0 : i32
    %c0_i32_1 = arith.constant 0 : i32
    return %c0_i32, %c0_i32_0 : i32, i32
  }
  func.func @transform_3(%arg0: i32, %arg1: memref<8x8xi32, #tpu.memory_space<smem>>) -> (i32, i32) {
    %c0_i32 = arith.constant 0 : i32
    %c0_i32_0 = arith.constant 0 : i32
    return %arg0, %c0_i32 : i32, i32
  }
}

</mosaic_0001>

<llo_original>
// kernel: tpu_custom_call.1
$region0: #{tpu_custom_call.1}
  #allocation0 [shape = 'u32[]', space=smem, size = 0x4, offset = 0x4, fixed_abs, tag = 'smem constant byte address 0x4 - core index']
  #allocation1 [shape = 'u32[144,128]{1,0:T(1,128)}', space=vmem, size = 0x12000, scoped, tag = 'internal scratch']
  #allocation2 [shape = 'f32[8,32]{1,0:T(8,128)}', space=vmem, size = 0x1000, scoped, tag = 'scratch operand']
  #allocation3 [shape = 's32[1]{0}', space=sflag, size = 0x4, scoped, tag = 'scoped memory for tpu_custom_call.1']
  #allocation4 [shape = 'u8[4096]{0}', space=smem, size = 0x1000, scoped, tag = 'prefetched SMEM operand 0']
  %s0 = inlined_call_operand.vmem [shape: s32[8,8], index: 0, kind: input, shape index: {}]
  %s1 = inlined_call_operand.vmem [shape: f32[256,32], index: 1, kind: input, shape index: {}]
  %s2 = inlined_call_operand.vmem [shape: f32[32,128], index: 2, kind: input, shape index: {}]
  %s3 = inlined_call_operand.vmem [shape: f32[1,128], index: 3, kind: input, shape index: {}]
  %s4 = inlined_call_operand.hbm [shape: f32[8,128], index: 4, kind: output, shape index: {}]
  %s5 = sld [smem:[#allocation0]]
  $region22: #{tpu_custom_call.1} parent=0
    _
  %s7 = ssub.s32 1, %s5
  %s8 = scalar_select 0, %s7, %s5
  %s9 = sshll.u32 %s0, 4
  %s10 = int_to_ptr.vmem [resolvable:$true] %s9
  %12 = dma.vmem_to_smem %s10, 128, [#allocation4], [#allocation3]
  %13 = dma.done [#allocation3], 128
  %14 = sfence
  $region1: #{tpu_custom_call.1} parent=0
    #allocation5 [shape = 'u8[4096]{0}', space=vmem, size = 0x1000, scoped, tag = 'output window, operand 0, single buffered']
    #allocation6 [shape = 's32[1]{0}', space=sflag, size = 0x4, scoped, tag = 'scoped memory for tpu_custom_call.1']
    %15 = vsyncpa [#allocation6], 0
    // Predicated region
    $region2: #{tpu_custom_call.1} parent=1 // pred_check
      _
    $region3: #{tpu_custom_call.1} parent=1 // pred_check_branch
      %17 = sbr.rel (0) target = $region5
    $region4: #{tpu_custom_call.1} parent=1 // pred_region
      _
    $region5: #{tpu_custom_call.1} parent=1 // pred_fallthru
      _
    // Predicated region
    $region6: #{tpu_custom_call.1} parent=1 // pred_check
      _
    $region7: #{tpu_custom_call.1} parent=1 // pred_check_branch
      %19 = sbr.rel (0) target = $region9
    $region8: #{tpu_custom_call.1} parent=1 // pred_region
      _
    $region9: #{tpu_custom_call.1} parent=1 // pred_fallthru
      _
    // Predicated region
    $region10: #{tpu_custom_call.1} parent=1 // pred_check
      _
    $region11: #{tpu_custom_call.1} parent=1 // pred_check_branch
      %21 = sbr.rel (0) target = $region13
    $region12: #{tpu_custom_call.1} parent=1 // pred_region
      _
    $region13: #{tpu_custom_call.1} parent=1 // pred_fallthru
      _
    %s22 = smul.u32 0, 8
    %s23 = smul.u32 %s22, 128
    %s24 = sld [smem:[#allocation4 + %s23]]
    %s25 = scalar_lea.vmem %s1, %s24
    %v26 = vld [vmem:[%s25] sm:$0x1]
    %v27 = vadd.f32 %v26, 0.0
    %s28 = sadd.s32 %s23, 1
    %s29 = sld [smem:[#allocation4 + %s28]]
    %s30 = scalar_lea.vmem %s1, %s29
    %v31 = vld [vmem:[%s30] sm:$0x1]
    %v32 = vadd.f32 %v27, %v31
    %s33 = sadd.s32 %s23, 2
    %s34 = sld [smem:[#allocation4 + %s33]]
    %s35 = scalar_lea.vmem %s1, %s34
    %v36 = vld [vmem:[%s35] sm:$0x1]
    %v37 = vadd.f32 %v32, %v36
    %s38 = sadd.s32 %s23, 3
    %s39 = sld [smem:[#allocation4 + %s38]]
    %s40 = scalar_lea.vmem %s1, %s39
    %v41 = vld [vmem:[%s40] sm:$0x1]
    %v42 = vadd.f32 %v37, %v41
    %s43 = sadd.s32 %s23, 4
    %s44 = sld [smem:[#allocation4 + %s43]]
    %s45 = scalar_lea.vmem %s1, %s44
    %v46 = vld [vmem:[%s45] sm:$0x1]
    %v47 = vadd.f32 %v42, %v46
    %s48 = sadd.s32 %s23, 5
    %s49 = sld [smem:[#allocation4 + %s48]]
    %s50 = scalar_lea.vmem %s1, %s49
    %v51 = vld [vmem:[%s50] sm:$0x1]
    %v52 = vadd.f32 %v47, %v51
    %s53 = sadd.s32 %s23, 6
    %s54 = sld [smem:[#allocation4 + %s53]]
    %s55 = scalar_lea.vmem %s1, %s54
    %v56 = vld [vmem:[%s55] sm:$0x1]
    %v57 = vadd.f32 %v52, %v56
    %s58 = sadd.s32 %s23, 7
    %s59 = sld [smem:[#allocation4 + %s58]]
    %s60 = scalar_lea.vmem %s1, %s59
    %v61 = vld [vmem:[%s60] sm:$0x1]
    %v62 = vadd.f32 %v57, %v61
    %v63 = vmul.f32 %v62, 0.125
    %vm64 = vcmask 253952
    %65 = vst.msk [vmem:[#allocation2] sm:$0x1] %vm64, %v63
    %s66 = sadd.s32 %s22, 1
    %s67 = smul.u32 %s66, 128
    %s68 = sld [smem:[#allocation4 + %s67]]
    %s69 = scalar_lea.vmem %s1, %s68
    %v70 = vld [vmem:[%s69] sm:$0x1]
    %v71 = vadd.f32 %v70, 0.0
    %s72 = sadd.s32 %s67, 1
    %s73 = sld [smem:[#allocation4 + %s72]]
    %s74 = scalar_lea.vmem %s1, %s73
    %v75 = vld [vmem:[%s74] sm:$0x1]
    %v76 = vadd.f32 %v71, %v75
    %s77 = sadd.s32 %s67, 2
    %s78 = sld [smem:[#allocation4 + %s77]]
    %s79 = scalar_lea.vmem %s1, %s78
    %v80 = vld [vmem:[%s79] sm:$0x1]
    %v81 = vadd.f32 %v76, %v80
    %s82 = sadd.s32 %s67, 3
    %s83 = sld [smem:[#allocation4 + %s82]]
    %s84 = scalar_lea.vmem %s1, %s83
    %v85 = vld [vmem:[%s84] sm:$0x1]
    %v86 = vadd.f32 %v81, %v85
    %s87 = sadd.s32 %s67, 4
    %s88 = sld [smem:[#allocation4 + %s87]]
    %s89 = scalar_lea.vmem %s1, %s88
    %v90 = vld [vmem:[%s89] sm:$0x1]
    %v91 = vadd.f32 %v86, %v90
    %s92 = sadd.s32 %s67, 5
    %s93 = sld [smem:[#allocation4 + %s92]]
    %s94 = scalar_lea.vmem %s1, %s93
    %v95 = vld [vmem:[%s94] sm:$0x1]
    %v96 = vadd.f32 %v91, %v95
    %s97 = sadd.s32 %s67, 6
    %s98 = sld [smem:[#allocation4 + %s97]]
    %s99 = scalar_lea.vmem %s1, %s98
    %v100 = vld [vmem:[%s99] sm:$0x1]
    %v101 = vadd.f32 %v96, %v100
    %s102 = sadd.s32 %s67, 7
    %s103 = sld [smem:[#allocation4 + %s102]]
    %s104 = scalar_lea.vmem %s1, %s103
    %v105 = vld [vmem:[%s104] sm:$0x1]
    %v106 = vadd.f32 %v101, %v105
    %v107 = vmul.f32 %v106, 0.125
    %108 = vst.msk [vmem:[#allocation2 + $0x1] sm:$0x1] %vm64, %v107
    %s109 = sadd.s32 %s22, 2
    %s110 = smul.u32 %s109, 128
    %s111 = sld [smem:[#allocation4 + %s110]]
    %s112 = scalar_lea.vmem %s1, %s111
    %v113 = vld [vmem:[%s112] sm:$0x1]
    %v114 = vadd.f32 %v113, 0.0
    %s115 = sadd.s32 %s110, 1
    %s116 = sld [smem:[#allocation4 + %s115]]
    %s117 = scalar_lea.vmem %s1, %s116
    %v118 = vld [vmem:[%s117] sm:$0x1]
    %v119 = vadd.f32 %v114, %v118
    %s120 = sadd.s32 %s110, 2
    %s121 = sld [smem:[#allocation4 + %s120]]
    %s122 = scalar_lea.vmem %s1, %s121
    %v123 = vld [vmem:[%s122] sm:$0x1]
    %v124 = vadd.f32 %v119, %v123
    %s125 = sadd.s32 %s110, 3
    %s126 = sld [smem:[#allocation4 + %s125]]
    %s127 = scalar_lea.vmem %s1, %s126
    %v128 = vld [vmem:[%s127] sm:$0x1]
    %v129 = vadd.f32 %v124, %v128
    %s130 = sadd.s32 %s110, 4
    %s131 = sld [smem:[#allocation4 + %s130]]
    %s132 = scalar_lea.vmem %s1, %s131
    %v133 = vld [vmem:[%s132] sm:$0x1]
    %v134 = vadd.f32 %v129, %v133
    %s135 = sadd.s32 %s110, 5
    %s136 = sld [smem:[#allocation4 + %s135]]
    %s137 = scalar_lea.vmem %s1, %s136
    %v138 = vld [vmem:[%s137] sm:$0x1]
    %v139 = vadd.f32 %v134, %v138
    %s140 = sadd.s32 %s110, 6
    %s141 = sld [smem:[#allocation4 + %s140]]
    %s142 = scalar_lea.vmem %s1, %s141
    %v143 = vld [vmem:[%s142] sm:$0x1]
    %v144 = vadd.f32 %v139, %v143
    %s145 = sadd.s32 %s110, 7
    %s146 = sld [smem:[#allocation4 + %s145]]
    %s147 = scalar_lea.vmem %s1, %s146
    %v148 = vld [vmem:[%s147] sm:$0x1]
    %v149 = vadd.f32 %v144, %v148
    %v150 = vmul.f32 %v149, 0.125
    %151 = vst.msk [vmem:[#allocation2 + $0x2] sm:$0x1] %vm64, %v150
    %s152 = sadd.s32 %s22, 3
    %s153 = smul.u32 %s152, 128
    %s154 = sld [smem:[#allocation4 + %s153]]
    %s155 = scalar_lea.vmem %s1, %s154
    %v156 = vld [vmem:[%s155] sm:$0x1]
    %v157 = vadd.f32 %v156, 0.0
    %s158 = sadd.s32 %s153, 1
    %s159 = sld [smem:[#allocation4 + %s158]]
    %s160 = scalar_lea.vmem %s1, %s159
    %v161 = vld [vmem:[%s160] sm:$0x1]
    %v162 = vadd.f32 %v157, %v161
    %s163 = sadd.s32 %s153, 2
    %s164 = sld [smem:[#allocation4 + %s163]]
    %s165 = scalar_lea.vmem %s1, %s164
    %v166 = vld [vmem:[%s165] sm:$0x1]
    %v167 = vadd.f32 %v162, %v166
    %s168 = sadd.s32 %s153, 3
    %s169 = sld [smem:[#allocation4 + %s168]]
    %s170 = scalar_lea.vmem %s1, %s169
    %v171 = vld [vmem:[%s170] sm:$0x1]
    %v172 = vadd.f32 %v167, %v171
    %s173 = sadd.s32 %s153, 4
    %s174 = sld [smem:[#allocation4 + %s173]]
    %s175 = scalar_lea.vmem %s1, %s174
    %v176 = vld [vmem:[%s175] sm:$0x1]
    %v177 = vadd.f32 %v172, %v176
    %s178 = sadd.s32 %s153, 5
    %s179 = sld [smem:[#allocation4 + %s178]]
    %s180 = scalar_lea.vmem %s1, %s179
    %v181 = vld [vmem:[%s180] sm:$0x1]
    %v182 = vadd.f32 %v177, %v181
    %s183 = sadd.s32 %s153, 6
    %s184 = sld [smem:[#allocation4 + %s183]]
    %s185 = scalar_lea.vmem %s1, %s184
    %v186 = vld [vmem:[%s185] sm:$0x1]
    %v187 = vadd.f32 %v182, %v186
    %s188 = sadd.s32 %s153, 7
    %s189 = sld [smem:[#allocation4 + %s188]]
    %s190 = scalar_lea.vmem %s1, %s189
    %v191 = vld [vmem:[%s190] sm:$0x1]
    %v192 = vadd.f32 %v187, %v191
    %v193 = vmul.f32 %v192, 0.125
    %194 = vst.msk [vmem:[#allocation2 + $0x3] sm:$0x1] %vm64, %v193
    %s195 = sadd.s32 %s22, 4
    %s196 = smul.u32 %s195, 128
    %s197 = sld [smem:[#allocation4 + %s196]]
    %s198 = scalar_lea.vmem %s1, %s197
    %v199 = vld [vmem:[%s198] sm:$0x1]
    %v200 = vadd.f32 %v199, 0.0
    %s201 = sadd.s32 %s196, 1
    %s202 = sld [smem:[#allocation4 + %s201]]
    %s203 = scalar_lea.vmem %s1, %s202
    %v204 = vld [vmem:[%s203] sm:$0x1]
    %v205 = vadd.f32 %v200, %v204
    %s206 = sadd.s32 %s196, 2
    %s207 = sld [smem:[#allocation4 + %s206]]
    %s208 = scalar_lea.vmem %s1, %s207
    %v209 = vld [vmem:[%s208] sm:$0x1]
    %v210 = vadd.f32 %v205, %v209
    %s211 = sadd.s32 %s196, 3
    %s212 = sld [smem:[#allocation4 + %s211]]
    %s213 = scalar_lea.vmem %s1, %s212
    %v214 = vld [vmem:[%s213] sm:$0x1]
    %v215 = vadd.f32 %v210, %v214
    %s216 = sadd.s32 %s196, 4
    %s217 = sld [smem:[#allocation4 + %s216]]
    %s218 = scalar_lea.vmem %s1, %s217
    %v219 = vld [vmem:[%s218] sm:$0x1]
    %v220 = vadd.f32 %v215, %v219
    %s221 = sadd.s32 %s196, 5
    %s222 = sld [smem:[#allocation4 + %s221]]
    %s223 = scalar_lea.vmem %s1, %s222
    %v224 = vld [vmem:[%s223] sm:$0x1]
    %v225 = vadd.f32 %v220, %v224
    %s226 = sadd.s32 %s196, 6
    %s227 = sld [smem:[#allocation4 + %s226]]
    %s228 = scalar_lea.vmem %s1, %s227
    %v229 = vld [vmem:[%s228] sm:$0x1]
    %v230 = vadd.f32 %v225, %v229
    %s231 = sadd.s32 %s196, 7
    %s232 = sld [smem:[#allocation4 + %s231]]
    %s233 = scalar_lea.vmem %s1, %s232
    %v234 = vld [vmem:[%s233] sm:$0x1]
    %v235 = vadd.f32 %v230, %v234
    %v236 = vmul.f32 %v235, 0.125
    %237 = vst.msk [vmem:[#allocation2 + $0x4] sm:$0x1] %vm64, %v236
    %s238 = sadd.s32 %s22, 5
    %s239 = smul.u32 %s238, 128
    %s240 = sld [smem:[#allocation4 + %s239]]
    %s241 = scalar_lea.vmem %s1, %s240
    %v242 = vld [vmem:[%s241] sm:$0x1]
    %v243 = vadd.f32 %v242, 0.0
    %s244 = sadd.s32 %s239, 1
    %s245 = sld [smem:[#allocation4 + %s244]]
    %s246 = scalar_lea.vmem %s1, %s245
    %v247 = vld [vmem:[%s246] sm:$0x1]
    %v248 = vadd.f32 %v243, %v247
    %s249 = sadd.s32 %s239, 2
    %s250 = sld [smem:[#allocation4 + %s249]]
    %s251 = scalar_lea.vmem %s1, %s250
    %v252 = vld [vmem:[%s251] sm:$0x1]
    %v253 = vadd.f32 %v248, %v252
    %s254 = sadd.s32 %s239, 3
    %s255 = sld [smem:[#allocation4 + %s254]]
    %s256 = scalar_lea.vmem %s1, %s255
    %v257 = vld [vmem:[%s256] sm:$0x1]
    %v258 = vadd.f32 %v253, %v257
    %s259 = sadd.s32 %s239, 4
    %s260 = sld [smem:[#allocation4 + %s259]]
    %s261 = scalar_lea.vmem %s1, %s260
    %v262 = vld [vmem:[%s261] sm:$0x1]
    %v263 = vadd.f32 %v258, %v262
    %s264 = sadd.s32 %s239, 5
    %s265 = sld [smem:[#allocation4 + %s264]]
    %s266 = scalar_lea.vmem %s1, %s265
    %v267 = vld [vmem:[%s266] sm:$0x1]
    %v268 = vadd.f32 %v263, %v267
    %s269 = sadd.s32 %s239, 6
    %s270 = sld [smem:[#allocation4 + %s269]]
    %s271 = scalar_lea.vmem %s1, %s270
    %v272 = vld [vmem:[%s271] sm:$0x1]
    %v273 = vadd.f32 %v268, %v272
    %s274 = sadd.s32 %s239, 7
    %s275 = sld [smem:[#allocation4 + %s274]]
    %s276 = scalar_lea.vmem %s1, %s275
    %v277 = vld [vmem:[%s276] sm:$0x1]
    %v278 = vadd.f32 %v273, %v277
    %v279 = vmul.f32 %v278, 0.125
    %280 = vst.msk [vmem:[#allocation2 + $0x5] sm:$0x1] %vm64, %v279
    %s281 = sadd.s32 %s22, 6
    %s282 = smul.u32 %s281, 128
    %s283 = sld [smem:[#allocation4 + %s282]]
    %s284 = scalar_lea.vmem %s1, %s283
    %v285 = vld [vmem:[%s284] sm:$0x1]
    %v286 = vadd.f32 %v285, 0.0
    %s287 = sadd.s32 %s282, 1
    %s288 = sld [smem:[#allocation4 + %s287]]
    %s289 = scalar_lea.vmem %s1, %s288
    %v290 = vld [vmem:[%s289] sm:$0x1]
    %v291 = vadd.f32 %v286, %v290
    %s292 = sadd.s32 %s282, 2
    %s293 = sld [smem:[#allocation4 + %s292]]
    %s294 = scalar_lea.vmem %s1, %s293
    %v295 = vld [vmem:[%s294] sm:$0x1]
    %v296 = vadd.f32 %v291, %v295
    %s297 = sadd.s32 %s282, 3
    %s298 = sld [smem:[#allocation4 + %s297]]
    %s299 = scalar_lea.vmem %s1, %s298
    %v300 = vld [vmem:[%s299] sm:$0x1]
    %v301 = vadd.f32 %v296, %v300
    %s302 = sadd.s32 %s282, 4
    %s303 = sld [smem:[#allocation4 + %s302]]
    %s304 = scalar_lea.vmem %s1, %s303
    %v305 = vld [vmem:[%s304] sm:$0x1]
    %v306 = vadd.f32 %v301, %v305
    %s307 = sadd.s32 %s282, 5
    %s308 = sld [smem:[#allocation4 + %s307]]
    %s309 = scalar_lea.vmem %s1, %s308
    %v310 = vld [vmem:[%s309] sm:$0x1]
    %v311 = vadd.f32 %v306, %v310
    %s312 = sadd.s32 %s282, 6
    %s313 = sld [smem:[#allocation4 + %s312]]
    %s314 = scalar_lea.vmem %s1, %s313
    %v315 = vld [vmem:[%s314] sm:$0x1]
    %v316 = vadd.f32 %v311, %v315
    %s317 = sadd.s32 %s282, 7
    %s318 = sld [smem:[#allocation4 + %s317]]
    %s319 = scalar_lea.vmem %s1, %s318
    %v320 = vld [vmem:[%s319] sm:$0x1]
    %v321 = vadd.f32 %v316, %v320
    %v322 = vmul.f32 %v321, 0.125
    %323 = vst.msk [vmem:[#allocation2 + $0x6] sm:$0x1] %vm64, %v322
    %s324 = sadd.s32 %s22, 7
    %s325 = smul.u32 %s324, 128
    %s326 = sld [smem:[#allocation4 + %s325]]
    %s327 = scalar_lea.vmem %s1, %s326
    %v328 = vld [vmem:[%s327] sm:$0x1]
    %v329 = vadd.f32 %v328, 0.0
    %s330 = sadd.s32 %s325, 1
    %s331 = sld [smem:[#allocation4 + %s330]]
    %s332 = scalar_lea.vmem %s1, %s331
    %v333 = vld [vmem:[%s332] sm:$0x1]
    %v334 = vadd.f32 %v329, %v333
    %s335 = sadd.s32 %s325, 2
    %s336 = sld [smem:[#allocation4 + %s335]]
    %s337 = scalar_lea.vmem %s1, %s336
    %v338 = vld [vmem:[%s337] sm:$0x1]
    %v339 = vadd.f32 %v334, %v338
    %s340 = sadd.s32 %s325, 3
    %s341 = sld [smem:[#allocation4 + %s340]]
    %s342 = scalar_lea.vmem %s1, %s341
    %v343 = vld [vmem:[%s342] sm:$0x1]
    %v344 = vadd.f32 %v339, %v343
    %s345 = sadd.s32 %s325, 4
    %s346 = sld [smem:[#allocation4 + %s345]]
    %s347 = scalar_lea.vmem %s1, %s346
    %v348 = vld [vmem:[%s347] sm:$0x1]
    %v349 = vadd.f32 %v344, %v348
    %s350 = sadd.s32 %s325, 5
    %s351 = sld [smem:[#allocation4 + %s350]]
    %s352 = scalar_lea.vmem %s1, %s351
    %v353 = vld [vmem:[%s352] sm:$0x1]
    %v354 = vadd.f32 %v349, %v353
    %s355 = sadd.s32 %s325, 6
    %s356 = sld [smem:[#allocation4 + %s355]]
    %s357 = scalar_lea.vmem %s1, %s356
    %v358 = vld [vmem:[%s357] sm:$0x1]
    %v359 = vadd.f32 %v354, %v358
    %s360 = sadd.s32 %s325, 7
    %s361 = sld [smem:[#allocation4 + %s360]]
    %s362 = scalar_lea.vmem %s1, %s361
    %v363 = vld [vmem:[%s362] sm:$0x1]
    %v364 = vadd.f32 %v359, %v363
    %v365 = vmul.f32 %v364, 0.125
    %366 = vst.msk [vmem:[#allocation2 + $0x7] sm:$0x1] %vm64, %v365
    %v367 = vld [vmem:[#allocation2] sm:$0xff]
    %v368 = vld [vmem:[%s2] sm:$0xff]
    %v369 = vld [vmem:[%s2 + $0x8] sm:$0xff]
    %v370 = vld [vmem:[%s2 + $0x10] sm:$0xff]
    %v371 = vld [vmem:[%s2 + $0x18] sm:$0xff]
    %v372 = vld [vmem:[%s3] sm:$0x1]
    %v374 = vlaneseq
    %v375 = vshrl.u32 %v374, 7
    %v376 = vsub.s32 0, %v375
    %v377 = vrot.slane %v372, %v376
    %vm379 = vcmask 261120
    %v381 = vsel %vm379, %v367, 0
    %383 = vmatprep.subr.mxu0 0.0
    %384 = vmatpush1.msra.mxu0 %v368
    %385 = vmatprep.subr.mxu0 0.0
    %386 = vmatpush1.msra.mxu0 %v369
    %387 = vmatprep.subr.mxu0 0.0
    %388 = vmatpush1.msra.mxu0 %v370
    %389 = vmatprep.subr.mxu0 0.0
    %390 = vmatpush1.msra.mxu0 %v371
    %391 = vmatprep.subr.mxu0 0.0
    %392 = vmatpush1.msra.mxu0 0.0
    %393 = vmatprep.subr.mxu0 0.0
    %394 = vmatpush1.msra.mxu0 0.0
    %395 = vmatprep.subr.mxu0 0.0
    %396 = vmatpush1.msra.mxu0 0.0
    %397 = vmatprep.subr.mxu0 0.0
    %398 = vmatpush1.msra.mxu0 0.0
    %399 = vmatprep.subr.mxu0 0.0
    %400 = vmatpush1.msra.mxu0 0.0
    %401 = vmatprep.subr.mxu0 0.0
    %402 = vmatpush1.msra.mxu0 0.0
    %403 = vmatprep.subr.mxu0 0.0
    %404 = vmatpush1.msra.mxu0 0.0
    %405 = vmatprep.subr.mxu0 0.0
    %406 = vmatpush1.msra.mxu0 0.0
    %407 = vmatprep.subr.mxu0 0.0
    %408 = vmatpush1.msra.mxu0 0.0
    %409 = vmatprep.subr.mxu0 0.0
    %410 = vmatpush1.msra.mxu0 0.0
    %411 = vmatprep.subr.mxu0 0.0
    %412 = vmatpush1.msra.mxu0 0.0
    %413 = vmatprep.subr.mxu0 0.0
    %414 = vmatpush1.msra.mxu0 0.0
    %415 = vmatprep.subr.mxu0 0.0
    %416 = vmatpush1.msra.mxu0 0.0
    %417 = vmatprep.subr.mxu0 0.0
    %418 = vmatpush1.msra.mxu0 0.0
    %419 = vmatprep.subr.mxu0 0.0
    %420 = vmatpush1.msra.mxu0 0.0
    %421 = vmatprep.subr.mxu0 0.0
    %422 = vmatpush1.msra.mxu0 0.0
    %423 = vmatprep.subr.mxu0 0.0
    %424 = vmatpush1.msra.mxu0 0.0
    %425 = vmatprep.subr.mxu0 0.0
    %426 = vmatpush1.msra.mxu0 0.0
    %427 = vmatprep.subr.mxu0 0.0
    %428 = vmatpush1.msra.mxu0 0.0
    %429 = vmatprep.subr.mxu0 0.0
    %430 = vmatpush1.msra.mxu0 0.0
    %431 = vmatprep.subr.mxu0 0.0
    %432 = vmatpush1.msra.mxu0 0.0
    %433 = vmatprep.subr.mxu0 0.0
    %434 = vmatpush1.msra.mxu0 0.0
    %435 = vmatprep.subr.mxu0 0.0
    %436 = vmatpush1.msra.mxu0 0.0
    %437 = vmatprep.subr.mxu0 0.0
    %438 = vmatpush1.msra.mxu0 0.0
    %439 = vmatprep.subr.mxu0 0.0
    %440 = vmatpush1.msra.mxu0 0.0
    %441 = vmatprep.subr.mxu0 0.0
    %442 = vmatpush1.msra.mxu0 0.0
    %443 = vmatprep.subr.mxu0 0.0
    %444 = vmatpush1.msra.mxu0 0.0
    %445 = vmatprep.subr.mxu0 0.0
    %446 = vmatpush1.msra.mxu0 0.0
    %447 = vmatprep.mubr.f32.mxu0 0.0
    %448 = vmatmul.mubr.f32.gmra.mrb[0].mxu0 %v381
    %v449 = vpop.f32.mrb[0].mxu0
    %v450 = vadd.f32 %v377, %v449
    %v451 = vpop.f32.mrb[0].mxu0
    %452 = vdwg.mxu0
    %453 = vmax.xlane.f32.xlu0 %v450
    %v454 = vpop.xlane.xlu0 %453
    %v455 = vsub.f32 %v450, %v454
    %v456 = vmul.f32 %v455, 1.442695
    %v457 = vpow.pop %v456
    %458 = vadd.xlane.f32.xlu0 %v457
    %v459 = vpop.xlane.xlu0 %458
    %v460 = vrcp.pop %v459
    %v461 = vmul.f32 %v457, %v460
    %462 = vst [vmem:[#allocation5] sm:$0xff] %v461
    // Predicated region
    $region14: #{tpu_custom_call.1} parent=1 // pred_check
      _
    $region15: #{tpu_custom_call.1} parent=1 // pred_check_branch
      %464 = sbr.rel (0) target = $region17
    $region16: #{tpu_custom_call.1} parent=1 // pred_region
      %s466 = ssub.s32 128, 128
      %467 = vsyncadd [#allocation6], %s466
      %s469 = sshll.u32 [#allocation5], 4
      %s470 = int_to_ptr.vmem [resolvable:$true] %s469
      %472 = dma.vmem_to_hbm [thread:$0]  %s470, 128, %s4, [#allocation6]
    $region17: #{tpu_custom_call.1} parent=1 // pred_fallthru
      _
    // Predicated region
    $region18: #{tpu_custom_call.1} parent=1 // pred_check
      _
    $region19: #{tpu_custom_call.1} parent=1 // pred_check_branch
      %474 = sbr.rel (0) target = $region21
    $region20: #{tpu_custom_call.1} parent=1 // pred_region
      %475 = dma.done [#allocation6], 128
    $region21: #{tpu_custom_call.1} parent=1 // pred_fallthru
      _
    %476 = vsyncpa [#allocation6], 1

</llo_original>
